<compile_context>
chip_gen: v6e
topology: v6e:2x2x1
jax: 0.10.0
libtpu: 0.0.40
codegen_flags: <defaults>
</compile_context>

<pallas_src>
import math

import jax
import jax.numpy as jnp
from jax.experimental import pallas as pl
from jax.experimental.pallas import tpu as pltpu


def mgu_rollout_kernel(logrho_ref, z0_ref, wcat_ref, bf_ref, wh_ref, bh_ref,
                       uo_ref, out_ref, z_scr, rho_scr):
    t = pl.program_id(0)
    B, D = z_scr.shape
    H = bf_ref.shape[1]
    # slice offsets into the fused [W_f | U_i | A] projection (single source of truth)
    o_f, o_u, o_a = 0, H, 2 * H

    @pl.when(t == 0)
    def _init():
        # Seed the carried state and hoist the loop-invariant rho sigmoid.
        z_scr[...] = z0_ref[...]
        rho_scr[...] = jax.nn.sigmoid(
            jnp.full((B, D), logrho_ref[0], dtype=jnp.float32))

    z = z_scr[...]                                     # (B, D)
    w = wcat_ref[...]                                  # (D, 2H + D)

    # --- fused projection of z, K == D == 2 -> do it on the VPU, not MXU ----
    zcat = z[:, 0:1] * w[0:1, :]                       # (B, 2H + D)
    for d in range(1, D):                              # D is static at trace time
        zcat = zcat + z[:, d:d + 1] * w[d:d + 1, :]

    f_t = jax.nn.sigmoid(zcat[:, o_f:o_f + H] + bf_ref[...])   # (B, H)
    u_i_z = zcat[:, o_u:o_u + H]                                # (B, H)
    a_z = zcat[:, o_a:o_a + D]                                  # (B, D)

    # --- hidden update (H x H matmul on the MXU) -----------------------------
    h_tilde = jnp.tanh(
        jnp.dot(f_t * u_i_z, wh_ref[...],
                preferred_element_type=jnp.float32) + bh_ref[...])
    # h_t = (1 - f_t) * u_i_z + f_t * h_tilde  (one VPU mul saved)
    h_t = u_i_z + f_t * (h_tilde - u_i_z)                       # (B, H)

    # --- output projection + rho blend ---------------------------------------
    u_o_h = jnp.dot(h_t, uo_ref[...], preferred_element_type=jnp.float32)
    # z_t = rho * U_o(h_t) + (1 - rho) * A(z)
    z_new = a_z + rho_scr[...] * (u_o_h - a_z)                  # (B, D)

    z_scr[...] = z_new                                 # carry to next timestep
    out_ref[t, :, :] = z_new.astype(out_ref.dtype)     # into resident output slab


def mgu_rollout(z0, params, num_steps):
    """Apply the MGU step `num_steps` times. Returns (num_steps, B, D)."""
    B, D = z0.shape
    H = params["W_h_T"].shape[0]
    w_cat = params["W_cat_T"]                          # pre-fused in init_params
    assert w_cat.shape == (D, 2 * H + D)

    def resident(shape):
        zeros = (0,) * len(shape)
        return pl.BlockSpec(shape, lambda t: zeros)    # DMA'd once, VMEM-resident

    grid_spec = pltpu.PrefetchScalarGridSpec(
        num_scalar_prefetch=0,
        grid=(num_steps,),
        in_specs=[
            pl.BlockSpec(memory_space=pltpu.MemorySpace.SMEM),  # log_rho (1,)
            resident((B, D)),                                   # z0
            resident((D, 2 * H + D)),                           # [W_f | U_i | A]^T
            resident((1, H)),                                   # b_f
            resident((H, H)),                                   # W_h^T
            resident((1, H)),                                   # b_h
            resident((H, D)),                                   # U_o^T
        ],
        # Constant block index -> output stays in VMEM across the whole rollout
        # and is written back to HBM with a single DMA at the end.
        out_specs=pl.BlockSpec((num_steps, B, D), lambda t: (0, 0, 0)),
        scratch_shapes=[
            pltpu.VMEM((B, D), jnp.float32),   # carried latent z
            pltpu.VMEM((B, D), jnp.float32),   # hoisted rho
        ],
    )

    return pl.pallas_call(
        mgu_rollout_kernel,
        out_shape=jax.ShapeDtypeStruct((num_steps, B, D), jnp.float32),
        grid_spec=grid_spec,
        compiler_params=pltpu.CompilerParams(
            dimension_semantics=("arbitrary",)),
    )(params["log_rho"], z0, w_cat, params["b_f"], params["W_h_T"],
      params["b_h"], params["U_o_T"])


def mgu_forward(z_tm1, params):
    """Single MGU step — exactly the PyTorch module's forward."""
    return mgu_rollout(z_tm1, params, num_steps=1)[0]


def make_2d_rotation_matrix(theta):
    return jnp.array([[math.cos(theta), -math.sin(theta)],
                      [math.sin(theta), math.cos(theta)]], dtype=jnp.float32)


def init_params(key, hidden_dim, latent_dim):
    """Deterministic synthetic init mirroring nn.Linear shapes (transposed)."""
    ks = jax.random.split(key, 6)

    def uniform(k, shape, fan_in):
        bound = 1.0 / math.sqrt(fan_in)
        return jax.random.uniform(k, shape, jnp.float32, -bound, bound)

    # nn.Linear(in, out) stores weight as (out, in); we store the transpose.
    W_f_T = uniform(ks[0], (latent_dim, hidden_dim), latent_dim)
    b_f = uniform(ks[1], (1, hidden_dim), latent_dim)
    W_h_T = uniform(ks[2], (hidden_dim, hidden_dim), hidden_dim)
    b_h = uniform(ks[3], (1, hidden_dim), hidden_dim)
    U_i_T = uniform(ks[4], (latent_dim, hidden_dim), latent_dim)
    U_o_T = uniform(ks[5], (hidden_dim, latent_dim), hidden_dim)
    # A.weight.data = 0.9 * rotation(pi/4); kernel uses A^T.
    A_T = (0.9 * make_2d_rotation_matrix(math.pi / 4)).T
    log_rho = jnp.zeros((1,), jnp.float32)
    # Fuse the three z-consuming projections ONCE (not per forward call).
    W_cat_T = jnp.concatenate([W_f_T, U_i_T, A_T], axis=1)
    return dict(W_f_T=W_f_T, b_f=b_f, W_h_T=W_h_T, b_h=b_h, U_i_T=U_i_T,
                U_o_T=U_o_T, A_T=A_T, log_rho=log_rho, W_cat_T=W_cat_T)


def mgu_reference_step(z_tm1, p):
    """Pure-JAX replica of the PyTorch module's forward (one step)."""
    rho = jax.nn.sigmoid(p["log_rho"][0])
    u_i_z = z_tm1 @ p["U_i_T"]
    f_t = jax.nn.sigmoid(z_tm1 @ p["W_f_T"] + p["b_f"])
    h_tilde = jnp.tanh((f_t * u_i_z) @ p["W_h_T"] + p["b_h"])
    h_t = (1.0 - f_t) * u_i_z + f_t * h_tilde
    return rho * (h_t @ p["U_o_T"]) + (1.0 - rho) * (z_tm1 @ p["A_T"])


if __name__ == "__main__":
    B = 8                 # multiple of 8 -> fills f32 sublanes
    latent_dim = 2        # A is forced to a 2x2 rotation => latent_dim == 2
    hidden_dim = 32
    T = 8                 # fused rollout length

    key = jax.random.PRNGKey(0)
    k_z, k_p = jax.random.split(key)
    z0 = jax.random.normal(k_z, (B, latent_dim), jnp.float32)
    params = init_params(k_p, hidden_dim, latent_dim)

    # --- single step: matches the PyTorch module's forward -------------------
    z1 = jax.block_until_ready(mgu_forward(z0, params))
    z1_ref = mgu_reference_step(z0, params)
    assert z1.shape == (B, latent_dim)
    assert jnp.allclose(z1, z1_ref, atol=1e-5, rtol=1e-5)

    # --- fused T-step rollout (weights VMEM-resident, z carried in scratch) --
    zs = jax.block_until_ready(mgu_rollout(z0, params, T))
    z = z0
    refs = []
    for _ in range(T):
        z = mgu_reference_step(z, params)
        refs.append(z)
    zs_ref = jnp.stack(refs, axis=0)
    assert zs.shape == (T, B, latent_dim)
    assert jnp.allclose(zs, zs_ref, atol=3e-5, rtol=1e-4)

    print("KERNEL_OK")
</pallas_src>

<mosaic_0001>
module attributes {stable_mosaic.version = 11 : i64} {
  func.func @mgu_rollout_kernel(%arg0: i32, %arg1: memref<1xf32, #tpu.memory_space<smem>>, %arg2: memref<8x2xf32, #tpu.memory_space<vmem>>, %arg3: memref<2x66xf32, #tpu.memory_space<vmem>>, %arg4: memref<1x32xf32, #tpu.memory_space<vmem>>, %arg5: memref<32x32xf32, #tpu.memory_space<vmem>>, %arg6: memref<1x32xf32, #tpu.memory_space<vmem>>, %arg7: memref<32x2xf32, #tpu.memory_space<vmem>>, %arg8: memref<1x8x2xf32, #tpu.memory_space<vmem>>, %arg9: memref<8x2xf32, #tpu.memory_space<vmem>>, %arg10: memref<8x2xf32, #tpu.memory_space<vmem>>) attributes {dimension_semantics = [#tpu.dimension_semantics<arbitrary>], iteration_bounds = array<i64: 1>, scalar_prefetch = 0 : i64, scratch_operands = 2 : i64, tpu.core_type = #tpu.core_type<tc>, window_params = [{transform_indices = @transform_0, window_bounds = array<i64: 1>}, {pipeline_mode = #tpu.pipeline_mode<synchronous>, transform_indices = @transform_1, window_bounds = array<i64: 8, 2>}, {pipeline_mode = #tpu.pipeline_mode<synchronous>, transform_indices = @transform_2, window_bounds = array<i64: 2, 66>}, {pipeline_mode = #tpu.pipeline_mode<synchronous>, transform_indices = @transform_3, window_bounds = array<i64: 1, 32>}, {pipeline_mode = #tpu.pipeline_mode<synchronous>, transform_indices = @transform_4, window_bounds = array<i64: 32, 32>}, {pipeline_mode = #tpu.pipeline_mode<synchronous>, transform_indices = @transform_5, window_bounds = array<i64: 1, 32>}, {pipeline_mode = #tpu.pipeline_mode<synchronous>, transform_indices = @transform_6, window_bounds = array<i64: 32, 2>}, {pipeline_mode = #tpu.pipeline_mode<synchronous>, transform_indices = @transform_7, window_bounds = array<i64: 1, 8, 2>}]} {
    %c0_i32 = arith.constant 0 : i32
    %0 = arith.cmpi eq, %arg0, %c0_i32 : i32
    %1 = arith.extui %0 : i1 to i32
    %c0_i32_0 = arith.constant 0 : i32
    %2 = arith.cmpi ne, %1, %c0_i32_0 : i32
    scf.if %2 {
      %c0_20 = arith.constant 0 : index
      %c0_21 = arith.constant 0 : index
      %48 = vector.load %arg2[%c0_20, %c0_21] : memref<8x2xf32, #tpu.memory_space<vmem>>, vector<8x2xf32>
      %c0_22 = arith.constant 0 : index
      %c0_23 = arith.constant 0 : index
      %49 = vector.load %arg9[%c0_22, %c0_23] : memref<8x2xf32, #tpu.memory_space<vmem>>, vector<8x2xf32>
      tpu.vector_store %arg9[%c0_22, %c0_23], %48 {strides = array<i32>} : memref<8x2xf32, #tpu.memory_space<vmem>>, vector<8x2xf32>,
      %c0_24 = arith.constant 0 : index
      %50 = memref.load %arg1[%c0_24] : memref<1xf32, #tpu.memory_space<smem>>
      %51 = vector.broadcast %50 : f32 to vector<8x2xf32>
      %52 = arith.negf %51 : vector<8x2xf32>
      %53 = math.exp %52 : vector<8x2xf32>
      %cst_25 = arith.constant 1.000000e+00 : f32
      %54 = vector.broadcast %cst_25 : f32 to vector<8x2xf32>
      %55 = arith.addf %54, %53 : vector<8x2xf32>
      %56 = arith.divf %54, %55 : vector<8x2xf32>
      %c0_26 = arith.constant 0 : index
      %c0_27 = arith.constant 0 : index
      %57 = vector.load %arg10[%c0_26, %c0_27] : memref<8x2xf32, #tpu.memory_space<vmem>>, vector<8x2xf32>
      tpu.vector_store %arg10[%c0_26, %c0_27], %56 {strides = array<i32>} : memref<8x2xf32, #tpu.memory_space<vmem>>, vector<8x2xf32>,
    } else {
    }
    %c0 = arith.constant 0 : index
    %c0_1 = arith.constant 0 : index
    %3 = vector.load %arg9[%c0, %c0_1] : memref<8x2xf32, #tpu.memory_space<vmem>>, vector<8x2xf32>
    %c0_2 = arith.constant 0 : index
    %c0_3 = arith.constant 0 : index
    %4 = vector.load %arg3[%c0_2, %c0_3] : memref<2x66xf32, #tpu.memory_space<vmem>>, vector<2x66xf32>
    %5 = vector.extract_strided_slice %3 {offsets = [0, 0], sizes = [8, 1], strides = [1, 1]} : vector<8x2xf32> to vector<8x1xf32>
    %6 = vector.extract_strided_slice %4 {offsets = [0, 0], sizes = [1, 66], strides = [1, 1]} : vector<2x66xf32> to vector<1x66xf32>
    %7 = vector.broadcast %5 : vector<8x1xf32> to vector<8x66xf32>
    %8 = vector.broadcast %6 : vector<1x66xf32> to vector<8x66xf32>
    %9 = arith.mulf %7, %8 : vector<8x66xf32>
    %10 = vector.extract_strided_slice %3 {offsets = [0, 1], sizes = [8, 1], strides = [1, 1]} : vector<8x2xf32> to vector<8x1xf32>
    %11 = vector.extract_strided_slice %4 {offsets = [1, 0], sizes = [1, 66], strides = [1, 1]} : vector<2x66xf32> to vector<1x66xf32>
    %12 = vector.broadcast %10 : vector<8x1xf32> to vector<8x66xf32>
    %13 = vector.broadcast %11 : vector<1x66xf32> to vector<8x66xf32>
    %14 = arith.mulf %12, %13 : vector<8x66xf32>
    %15 = arith.addf %9, %14 : vector<8x66xf32>
    %16 = vector.extract_strided_slice %15 {offsets = [0, 0], sizes = [8, 32], strides = [1, 1]} : vector<8x66xf32> to vector<8x32xf32>
    %c0_4 = arith.constant 0 : index
    %c0_5 = arith.constant 0 : index
    %17 = vector.load %arg4[%c0_4, %c0_5] : memref<1x32xf32, #tpu.memory_space<vmem>>, vector<1x32xf32>
    %18 = vector.broadcast %17 : vector<1x32xf32> to vector<8x32xf32>
    %19 = arith.addf %16, %18 : vector<8x32xf32>
    %20 = arith.negf %19 : vector<8x32xf32>
    %21 = math.exp %20 : vector<8x32xf32>
    %cst = arith.constant 1.000000e+00 : f32
    %22 = vector.broadcast %cst : f32 to vector<8x32xf32>
    %23 = arith.addf %22, %21 : vector<8x32xf32>
    %24 = arith.divf %22, %23 : vector<8x32xf32>
    %25 = vector.extract_strided_slice %15 {offsets = [0, 32], sizes = [8, 32], strides = [1, 1]} : vector<8x66xf32> to vector<8x32xf32>
    %26 = vector.extract_strided_slice %15 {offsets = [0, 64], sizes = [8, 2], strides = [1, 1]} : vector<8x66xf32> to vector<8x2xf32>
    %27 = arith.mulf %24, %25 : vector<8x32xf32>
    %c0_6 = arith.constant 0 : index
    %c0_7 = arith.constant 0 : index
    %28 = vector.load %arg5[%c0_6, %c0_7] : memref<32x32xf32, #tpu.memory_space<vmem>>, vector<32x32xf32>
    %cst_8 = arith.constant dense<0.000000e+00> : vector<8x32xf32>
    %29 = tpu.matmul %27, %28, %cst_8 {dimension_numbers = #tpu.dot_dimension_numbers<[1], [0], [0], [1], [0, 0, 1, 1], [], []>} : vector<8x32xf32>, vector<32x32xf32>, vector<8x32xf32> -> vector<8x32xf32>
    %c0_9 = arith.constant 0 : index
    %c0_10 = arith.constant 0 : index
    %30 = vector.load %arg6[%c0_9, %c0_10] : memref<1x32xf32, #tpu.memory_space<vmem>>, vector<1x32xf32>
    %31 = vector.broadcast %30 : vector<1x32xf32> to vector<8x32xf32>
    %32 = arith.addf %29, %31 : vector<8x32xf32>
    %33 = math.tanh %32 : vector<8x32xf32>
    %34 = arith.subf %33, %25 : vector<8x32xf32>
    %35 = arith.mulf %24, %34 : vector<8x32xf32>
    %36 = arith.addf %25, %35 : vector<8x32xf32>
    %c0_11 = arith.constant 0 : index
    %c0_12 = arith.constant 0 : index
    %37 = vector.load %arg7[%c0_11, %c0_12] : memref<32x2xf32, #tpu.memory_space<vmem>>, vector<32x2xf32>
    %cst_13 = arith.constant dense<0.000000e+00> : vector<8x2xf32>
    %38 = tpu.matmul %36, %37, %cst_13 {dimension_numbers = #tpu.dot_dimension_numbers<[1], [0], [0], [1], [0, 0, 1, 1], [], []>} : vector<8x32xf32>, vector<32x2xf32>, vector<8x2xf32> -> vector<8x2xf32>
    %c0_14 = arith.constant 0 : index
    %c0_15 = arith.constant 0 : index
    %39 = vector.load %arg10[%c0_14, %c0_15] : memref<8x2xf32, #tpu.memory_space<vmem>>, vector<8x2xf32>
    %40 = arith.subf %38, %26 : vector<8x2xf32>
    %41 = arith.mulf %39, %40 : vector<8x2xf32>
    %42 = arith.addf %26, %41 : vector<8x2xf32>
    %c0_16 = arith.constant 0 : index
    %c0_17 = arith.constant 0 : index
    %43 = vector.load %arg9[%c0_16, %c0_17] : memref<8x2xf32, #tpu.memory_space<vmem>>, vector<8x2xf32>
    tpu.vector_store %arg9[%c0_16, %c0_17], %42 {strides = array<i32>} : memref<8x2xf32, #tpu.memory_space<vmem>>, vector<8x2xf32>,
    %44 = arith.index_cast %arg0 : i32 to index
    %c0_18 = arith.constant 0 : index
    %c0_19 = arith.constant 0 : index
    %45 = vector.load %arg8[%44, %c0_18, %c0_19] : memref<1x8x2xf32, #tpu.memory_space<vmem>>, vector<1x8x2xf32>
    %46 = vector.shape_cast %45 : vector<1x8x2xf32> to vector<8x2xf32>
    %47 = vector.shape_cast %42 : vector<8x2xf32> to vector<1x8x2xf32>
    tpu.vector_store %arg8[%44, %c0_18, %c0_19], %47 {strides = array<i32>} : memref<1x8x2xf32, #tpu.memory_space<vmem>>, vector<1x8x2xf32>,
    return
  }
  func.func @transform_0(%arg0: i32) -> i32 {
    %c0_i32 = arith.constant 0 : i32
    %c0_i32_0 = arith.constant 0 : i32
    return %c0_i32 : i32
  }
  func.func @transform_1(%arg0: i32) -> (i32, i32) {
    %c0_i32 = arith.constant 0 : i32
    %c0_i32_0 = arith.constant 0 : i32
    %c0_i32_1 = arith.constant 0 : i32
    return %c0_i32, %c0_i32_0 : i32, i32
  }
  func.func @transform_2(%arg0: i32) -> (i32, i32) {
    %c0_i32 = arith.constant 0 : i32
    %c0_i32_0 = arith.constant 0 : i32
    %c0_i32_1 = arith.constant 0 : i32
    return %c0_i32, %c0_i32_0 : i32, i32
  }
  func.func @transform_3(%arg0: i32) -> (i32, i32) {
    %c0_i32 = arith.constant 0 : i32
    %c0_i32_0 = arith.constant 0 : i32
    %c0_i32_1 = arith.constant 0 : i32
    return %c0_i32, %c0_i32_0 : i32, i32
  }
  func.func @transform_4(%arg0: i32) -> (i32, i32) {
    %c0_i32 = arith.constant 0 : i32
    %c0_i32_0 = arith.constant 0 : i32
    %c0_i32_1 = arith.constant 0 : i32
    return %c0_i32, %c0_i32_0 : i32, i32
  }
  func.func @transform_5(%arg0: i32) -> (i32, i32) {
    %c0_i32 = arith.constant 0 : i32
    %c0_i32_0 = arith.constant 0 : i32
    %c0_i32_1 = arith.constant 0 : i32
    return %c0_i32, %c0_i32_0 : i32, i32
  }
  func.func @transform_6(%arg0: i32) -> (i32, i32) {
    %c0_i32 = arith.constant 0 : i32
    %c0_i32_0 = arith.constant 0 : i32
    %c0_i32_1 = arith.constant 0 : i32
    return %c0_i32, %c0_i32_0 : i32, i32
  }
  func.func @transform_7(%arg0: i32) -> (i32, i32, i32) {
    %c0_i32 = arith.constant 0 : i32
    %c0_i32_0 = arith.constant 0 : i32
    %c0_i32_1 = arith.constant 0 : i32
    %c0_i32_2 = arith.constant 0 : i32
    return %c0_i32, %c0_i32_0, %c0_i32_1 : i32, i32, i32
  }
}

</mosaic_0001>

<llo_original>
// kernel: tpu_custom_call.1
$region0: #{tpu_custom_call.1}
  #allocation0 [shape = 'u32[]', space=smem, size = 0x4, offset = 0x4, fixed_abs, tag = 'smem constant byte address 0x4 - core index']
  #allocation1 [shape = 'u32[144,128]{1,0:T(1,128)}', space=vmem, size = 0x12000, scoped, tag = 'internal scratch']
  #allocation2 [shape = 'f32[8,2]{1,0:T(8,128)}', space=vmem, size = 0x1000, scoped, tag = 'scratch operand']
  #allocation3 [shape = 'f32[8,2]{1,0:T(8,128)}', space=vmem, size = 0x1000, scoped, tag = 'scratch operand']
  #allocation4 [shape = 'f32[1]{0:T(128)S(6)}', space=smem, size = 0x200, scoped, tag = 'scoped memory for tpu_custom_call.1']
  %s0 = inlined_call_operand.<no memory space> [shape: f32[1], index: 0, kind: input, shape index: {}]
  %s1 = inlined_call_operand.vmem [shape: f32[8,2], index: 1, kind: input, shape index: {}]
  %s2 = inlined_call_operand.vmem [shape: f32[2,66], index: 2, kind: input, shape index: {}]
  %s3 = inlined_call_operand.vmem [shape: f32[1,32], index: 3, kind: input, shape index: {}]
  %s4 = inlined_call_operand.vmem [shape: f32[32,32], index: 4, kind: input, shape index: {}]
  %s5 = inlined_call_operand.vmem [shape: f32[1,32], index: 5, kind: input, shape index: {}]
  %s6 = inlined_call_operand.vmem [shape: f32[32,2], index: 6, kind: input, shape index: {}]
  %s7 = inlined_call_operand.vmem [shape: f32[1,8,2], index: 7, kind: output, shape index: {}]
  %s8 = sld [smem:[#allocation0]]
  $region42: #{tpu_custom_call.1} parent=0
    _
  %s10 = ssub.s32 1, %s8
  %s11 = scalar_select 0, %s10, %s8
  %12 = sst [smem:[#allocation4]] %s0
  // Predicated region
  $region2: #{tpu_custom_call.1} parent=0 // pred_check
    _
  $region3: #{tpu_custom_call.1} parent=0 // pred_check_branch
    %14 = sbr.rel (0) target = $region5
  $region4: #{tpu_custom_call.1} parent=0 // pred_region
    _
  $region5: #{tpu_custom_call.1} parent=0 // pred_fallthru
    _
  // Predicated region
  $region6: #{tpu_custom_call.1} parent=0 // pred_check
    _
  $region7: #{tpu_custom_call.1} parent=0 // pred_check_branch
    %16 = sbr.rel (0) target = $region9
  $region8: #{tpu_custom_call.1} parent=0 // pred_region
    _
  $region9: #{tpu_custom_call.1} parent=0 // pred_fallthru
    _
  // Predicated region
  $region10: #{tpu_custom_call.1} parent=0 // pred_check
    _
  $region11: #{tpu_custom_call.1} parent=0 // pred_check_branch
    %18 = sbr.rel (0) target = $region13
  $region12: #{tpu_custom_call.1} parent=0 // pred_region
    _
  $region13: #{tpu_custom_call.1} parent=0 // pred_fallthru
    _
  // Predicated region
  $region14: #{tpu_custom_call.1} parent=0 // pred_check
    _
  $region15: #{tpu_custom_call.1} parent=0 // pred_check_branch
    %20 = sbr.rel (0) target = $region17
  $region16: #{tpu_custom_call.1} parent=0 // pred_region
    _
  $region17: #{tpu_custom_call.1} parent=0 // pred_fallthru
    _
  // Predicated region
  $region18: #{tpu_custom_call.1} parent=0 // pred_check
    _
  $region19: #{tpu_custom_call.1} parent=0 // pred_check_branch
    %22 = sbr.rel (0) target = $region21
  $region20: #{tpu_custom_call.1} parent=0 // pred_region
    _
  $region21: #{tpu_custom_call.1} parent=0 // pred_fallthru
    _
  // Predicated region
  $region22: #{tpu_custom_call.1} parent=0 // pred_check
    _
  $region23: #{tpu_custom_call.1} parent=0 // pred_check_branch
    %24 = sbr.rel (0) target = $region25
  $region24: #{tpu_custom_call.1} parent=0 // pred_region
    _
  $region25: #{tpu_custom_call.1} parent=0 // pred_fallthru
    _
  // Predicated region
  $region26: #{tpu_custom_call.1} parent=0 // pred_check
    _
  $region27: #{tpu_custom_call.1} parent=0 // pred_check_branch
    %26 = sbr.rel (0) target = $region29
  $region28: #{tpu_custom_call.1} parent=0 // pred_region
    _
  $region29: #{tpu_custom_call.1} parent=0 // pred_fallthru
    _
  %p27 = scmp.eq.s32.totalorder 0, 0
  // Predicated region
  $region30: #{tpu_custom_call.1} parent=0 // pred_check
    %p28 = pneg %p27
  $region31: #{tpu_custom_call.1} parent=0 // pred_check_branch
    %30 = sbr.rel (%p28) target = $region33
  $region32: #{tpu_custom_call.1} parent=0 // pred_region
    %v31 = vld [vmem:[%s1] sm:$0xff]
    %vm32 = vcmask 15360
    %33 = vst.msk [vmem:[#allocation2] sm:$0xff] %vm32, %v31
    %s34 = sld [smem:[#allocation4]]
    %v35 = vstv %s34
    %v36 = vxor.u32 %v35, 2147483648
    %v37 = vmul.f32 %v36, 1.442695
    %v38 = vpow.pop %v37
    %v39 = vadd.f32 %v38, 1.0
    %v40 = vrcp.pop %v39
    %v41 = vmul.f32 1.0, %v40
    %42 = vst.msk [vmem:[#allocation3] sm:$0xff] %vm32, %v41
  $region33: #{tpu_custom_call.1} parent=0 // pred_fallthru
    _
  %v43 = vld [vmem:[#allocation2] sm:$0xff]
  %v44 = vld [vmem:[%s2] sm:$0x3]
  %46 = vset.pattern.permute.xlu0 0
  %47 = vperm.xlu0 %46, %v43
  %v48 = vpop.permute.xlu0 %47
  %v50 = vlaneseq
  %v51 = vshrl.u32 %v50, 7
  %v52 = vsub.s32 0, %v51
  %v53 = vrot.slane %v44, %v52
  %v54 = vmul.f32 %v48, %v53
  %55 = vset.pattern.permute.xlu0 1
  %56 = vperm.xlu0 %55, %v43
  %v57 = vpop.permute.xlu0 %56
  %v59 = vlaneseq
  %v60 = vshrl.u32 %v59, 7
  %v61 = vsub.s32 1, %v60
  %v62 = vrot.slane %v44, %v61
  %v63 = vmul.f32 %v57, %v62
  %v64 = vadd.f32 %v54, %v63
  %v65 = vld [vmem:[%s3] sm:$0x1]
  %v67 = vlaneseq
  %v68 = vshrl.u32 %v67, 7
  %v69 = vsub.s32 0, %v68
  %v70 = vrot.slane %v65, %v69
  %v72 = vadd.f32 %v64, %v70
  %v73 = vxor.u32 %v72, 2147483648
  %v74 = vmul.f32 %v73, 1.442695
  %v75 = vpow.pop %v74
  %v76 = vadd.f32 %v75, 1.0
  %v77 = vrcp.pop %v76
  %v78 = vmul.f32 1.0, %v77
  %80 = vrot.lane.b32.xlu0 %v64, 96
  %v81 = vpop.permute.xlu0 %80
  %v83 = vmul.f32 %v78, %v81
  %v84 = vld [vmem:[%s4] sm:$0xff]
  %v85 = vld [vmem:[%s4 + $0x8] sm:$0xff]
  %v86 = vld [vmem:[%s4 + $0x10] sm:$0xff]
  %v87 = vld [vmem:[%s4 + $0x18] sm:$0xff]
  %v88 = vld [vmem:[%s5] sm:$0x1]
  %v90 = vlaneseq
  %v91 = vshrl.u32 %v90, 7
  %v92 = vsub.s32 0, %v91
  %v93 = vrot.slane %v88, %v92
  %vm95 = vcmask 261120
  %v97 = vsel %vm95, %v83, 0
  %99 = vmatprep.subr.mxu0 0.0
  %100 = vmatpush1.msra.mxu0 0.0
  %101 = vmatprep.subr.mxu0 0.0
  %102 = vmatpush1.msra.mxu0 0.0
  %103 = vmatprep.subr.mxu0 0.0
  %104 = vmatpush1.msra.mxu0 0.0
  %105 = vmatprep.subr.mxu0 0.0
  %106 = vmatpush1.msra.mxu0 0.0
  %107 = vmatprep.subr.mxu0 0.0
  %108 = vmatpush1.msra.mxu0 0.0
  %109 = vmatprep.subr.mxu0 0.0
  %110 = vmatpush1.msra.mxu0 0.0
  %111 = vmatprep.subr.mxu0 0.0
  %112 = vmatpush1.msra.mxu0 0.0
  %113 = vmatprep.subr.mxu0 0.0
  %114 = vmatpush1.msra.mxu0 0.0
  %115 = vmatprep.subr.mxu0 0.0
  %116 = vmatpush1.msra.mxu0 0.0
  %117 = vmatprep.subr.mxu0 0.0
  %118 = vmatpush1.msra.mxu0 0.0
  %119 = vmatprep.subr.mxu0 0.0
  %120 = vmatpush1.msra.mxu0 0.0
  %121 = vmatprep.subr.mxu0 0.0
  %122 = vmatpush1.msra.mxu0 0.0
  %123 = vmatprep.subr.mxu0 0.0
  %124 = vmatpush1.msra.mxu0 %v87
  %125 = vmatprep.subr.mxu0 0.0
  %126 = vmatpush1.msra.mxu0 %v86
  %127 = vmatprep.subr.mxu0 0.0
  %128 = vmatpush1.msra.mxu0 %v85
  %129 = vmatprep.subr.mxu0 0.0
  %130 = vmatpush1.msra.mxu0 %v84
  %131 = vmatprep.subr.mxu0 0.0
  %132 = vmatpush2.msra.mxu0 0.0
  %133 = vmatprep.subr.mxu0 0.0
  %134 = vmatpush2.msra.mxu0 0.0
  %135 = vmatprep.subr.mxu0 0.0
  %136 = vmatpush2.msra.mxu0 0.0
  %137 = vmatprep.subr.mxu0 0.0
  %138 = vmatpush2.msra.mxu0 0.0
  %139 = vmatprep.subr.mxu0 0.0
  %140 = vmatpush2.msra.mxu0 0.0
  %141 = vmatprep.subr.mxu0 0.0
  %142 = vmatpush2.msra.mxu0 0.0
  %143 = vmatprep.subr.mxu0 0.0
  %144 = vmatpush2.msra.mxu0 0.0
  %145 = vmatprep.subr.mxu0 0.0
  %146 = vmatpush2.msra.mxu0 0.0
  %147 = vmatprep.subr.mxu0 0.0
  %148 = vmatpush2.msra.mxu0 0.0
  %149 = vmatprep.subr.mxu0 0.0
  %150 = vmatpush2.msra.mxu0 0.0
  %151 = vmatprep.subr.mxu0 0.0
  %152 = vmatpush2.msra.mxu0 0.0
  %153 = vmatprep.subr.mxu0 0.0
  %154 = vmatpush2.msra.mxu0 0.0
  %155 = vmatprep.subr.mxu0 0.0
  %156 = vmatpush2.msra.mxu0 0.0
  %157 = vmatprep.subr.mxu0 0.0
  %158 = vmatpush2.msra.mxu0 0.0
  %159 = vmatprep.subr.mxu0 0.0
  %160 = vmatpush2.msra.mxu0 0.0
  %161 = vmatprep.subr.mxu0 0.0
  %162 = vmatpush2.msra.mxu0 0.0
  %163 = vmatprep.mubr.f32.mxu0 0.0
  %164 = vmatmul.mubr.f32.gmra.mxu0 %v97
  %v165 = vpop.f32.mrf.mxu0
  %v166 = vadd.f32 %v93, %v165
  %v167 = vpop.f32.mrf.mxu0
  %168 = vdwg.mxu0
  %v169 = vtanh.pop %v166
  %v170 = vsub.f32 %v169, %v81
  %v171 = vmul.f32 %v78, %v170
  %173 = vrot.lane.b32.xlu0 %v171, 32
  %v174 = vpop.permute.xlu0 %173
  %v176 = vadd.f32 %v64, %v174
  %v177 = vld [vmem:[%s6] sm:$0xff]
  %v178 = vld [vmem:[%s6 + $0x8] sm:$0xff]
  %v179 = vld [vmem:[%s6 + $0x10] sm:$0xff]
  %v180 = vld [vmem:[%s6 + $0x18] sm:$0xff]
  %182 = vrot.lane.b32.xlu0 %v176, 96
  %v183 = vpop.permute.xlu0 %182
  %v184 = vsel %vm95, %v183, 0
  %186 = vmatprep.subr.mxu0 0.0
  %187 = vmatpush1.msra.mxu0 0.0
  %188 = vmatprep.subr.mxu0 0.0
  %189 = vmatpush1.msra.mxu0 0.0
  %190 = vmatprep.subr.mxu0 0.0
  %191 = vmatpush1.msra.mxu0 0.0
  %192 = vmatprep.subr.mxu0 0.0
  %193 = vmatpush1.msra.mxu0 0.0
  %194 = vmatprep.subr.mxu0 0.0
  %195 = vmatpush1.msra.mxu0 0.0
  %196 = vmatprep.subr.mxu0 0.0
  %197 = vmatpush1.msra.mxu0 0.0
  %198 = vmatprep.subr.mxu0 0.0
  %199 = vmatpush1.msra.mxu0 0.0
  %200 = vmatprep.subr.mxu0 0.0
  %201 = vmatpush1.msra.mxu0 0.0
  %202 = vmatprep.subr.mxu0 0.0
  %203 = vmatpush1.msra.mxu0 0.0
  %204 = vmatprep.subr.mxu0 0.0
  %205 = vmatpush1.msra.mxu0 0.0
  %206 = vmatprep.subr.mxu0 0.0
  %207 = vmatpush1.msra.mxu0 0.0
  %208 = vmatprep.subr.mxu0 0.0
  %209 = vmatpush1.msra.mxu0 0.0
  %210 = vmatprep.subr.mxu0 0.0
  %211 = vmatpush1.msra.mxu0 %v180
  %212 = vmatprep.subr.mxu0 0.0
  %213 = vmatpush1.msra.mxu0 %v179
  %214 = vmatprep.subr.mxu0 0.0
  %215 = vmatpush1.msra.mxu0 %v178
  %216 = vmatprep.subr.mxu0 0.0
  %217 = vmatpush1.msra.mxu0 %v177
  %218 = vmatprep.subr.mxu0 0.0
  %219 = vmatpush2.msra.mxu0 0.0
  %220 = vmatprep.subr.mxu0 0.0
  %221 = vmatpush2.msra.mxu0 0.0
  %222 = vmatprep.subr.mxu0 0.0
  %223 = vmatpush2.msra.mxu0 0.0
  %224 = vmatprep.subr.mxu0 0.0
  %225 = vmatpush2.msra.mxu0 0.0
  %226 = vmatprep.subr.mxu0 0.0
  %227 = vmatpush2.msra.mxu0 0.0
  %228 = vmatprep.subr.mxu0 0.0
  %229 = vmatpush2.msra.mxu0 0.0
  %230 = vmatprep.subr.mxu0 0.0
  %231 = vmatpush2.msra.mxu0 0.0
  %232 = vmatprep.subr.mxu0 0.0
  %233 = vmatpush2.msra.mxu0 0.0
  %234 = vmatprep.subr.mxu0 0.0
  %235 = vmatpush2.msra.mxu0 0.0
  %236 = vmatprep.subr.mxu0 0.0
  %237 = vmatpush2.msra.mxu0 0.0
  %238 = vmatprep.subr.mxu0 0.0
  %239 = vmatpush2.msra.mxu0 0.0
  %240 = vmatprep.subr.mxu0 0.0
  %241 = vmatpush2.msra.mxu0 0.0
  %242 = vmatprep.subr.mxu0 0.0
  %243 = vmatpush2.msra.mxu0 0.0
  %244 = vmatprep.subr.mxu0 0.0
  %245 = vmatpush2.msra.mxu0 0.0
  %246 = vmatprep.subr.mxu0 0.0
  %247 = vmatpush2.msra.mxu0 0.0
  %248 = vmatprep.subr.mxu0 0.0
  %249 = vmatpush2.msra.mxu0 0.0
  %250 = vmatprep.mubr.f32.mxu0 0.0
  %251 = vmatmul.mubr.f32.gmra.mxu0 %v184
  %v252 = vpop.f32.mrf.mxu0
  %v253 = vadd.f32 0.0, %v252
  %v254 = vpop.f32.mrf.mxu0
  %255 = vdwg.mxu0
  %v256 = vld [vmem:[#allocation3] sm:$0xff]
  %257 = vrot.lane.b32.xlu0 %v64, 64
  %v258 = vpop.permute.xlu0 %257
  %v260 = vsub.f32 %v253, %v258
  %v261 = vmul.f32 %v256, %v260
  %263 = vrot.lane.b32.xlu0 %v261, 64
  %v264 = vpop.permute.xlu0 %263
  %v266 = vadd.f32 %v64, %v264
  %268 = vrot.lane.b32.xlu0 %v266, 64
  %v269 = vpop.permute.xlu0 %268
  %vm271 = vcmask 15360
  %272 = vst.msk [vmem:[#allocation2] sm:$0xff] %vm271, %v269
  %s273 = smul.u32 0, 8
  %s274 = scalar_lea.vmem %s7, %s273
  %275 = vst.msk [vmem:[%s274] sm:$0xff] %vm271, %v269
  // Predicated region
  $region34: #{tpu_custom_call.1} parent=0 // pred_check
    _
  $region35: #{tpu_custom_call.1} parent=0 // pred_check_branch
    %277 = sbr.rel (0) target = $region37
  $region36: #{tpu_custom_call.1} parent=0 // pred_region
    _
  $region37: #{tpu_custom_call.1} parent=0 // pred_fallthru
    _
  // Predicated region
  $region38: #{tpu_custom_call.1} parent=0 // pred_check
    _
  $region39: #{tpu_custom_call.1} parent=0 // pred_check_branch
    %279 = sbr.rel (0) target = $region41
  $region40: #{tpu_custom_call.1} parent=0 // pred_region
    _
  $region41: #{tpu_custom_call.1} parent=0 // pred_fallthru
    _

</llo_original>
